<compile_context>
chip_gen: v7x
topology: tpu7x:2x2x1
jax: 0.10.0
libtpu: 0.0.40
codegen_flags: <defaults>
</compile_context>

<pallas_src>
import functools

import jax
import jax.numpy as jnp
import numpy as np
from jax.experimental import pallas as pl
from jax.experimental.pallas import tpu as pltpu


def _wttm_kernel(ys_ref, yt_ref, out_ref, *, gamma, n_rows, block_n, needs_mask):
    """One (block_n, C) batch tile; adds sum_i norm_i*KL_i to this partition's output."""
    s_idx = pl.program_id(1)

    @pl.when(s_idx == 0)
    def _():
        out_ref[...] = jnp.zeros_like(out_ref)

    # Inputs may arrive as bf16; all math is done in f32 on-chip.
    ys = ys_ref[...].astype(jnp.float32)   # [TN, C] student logits
    yt = yt_ref[...].astype(jnp.float32)   # [TN, C] teacher logits

    xs = ys - jnp.max(ys, axis=1, keepdims=True)          # shifted student logits
    xt = yt - jnp.max(yt, axis=1, keepdims=True)          # shifted teacher logits

    sum_s = jnp.sum(jnp.exp(xs), axis=1, keepdims=True)   # [TN,1]
    lse_s = jnp.log(sum_s)

    e_t = jnp.exp(xt)                                     # [TN,C]
    sum_t = jnp.sum(e_t, axis=1, keepdims=True)           # [TN,1]

    # p_t^gamma = a * u  with per-row scalar a = sum_t**-gamma and full-tile u.
    # gamma is a compile-time constant -> trace-time special-casing of the EUP work.
    if gamma == 1.0:            # plain softmax: reuse e_t, only 2 full-tile exps
        u, sum_u = e_t, sum_t
        a = 1.0 / sum_t
    elif gamma == 0.5:          # sqrt path: reuse e_t, EUP sqrt instead of a 3rd exp
        u = jnp.sqrt(e_t)
        sum_u = jnp.sum(u, axis=1, keepdims=True)
        a = jax.lax.rsqrt(sum_t)
    else:
        u = jnp.exp(gamma * xt)
        sum_u = jnp.sum(u, axis=1, keepdims=True)
        a = jnp.exp(-gamma * jnp.log(sum_t))

    # Fused norm_i * KL_i (no renormalization divide, no log_softmax temporaries):
    #   norm*KL = a * [ sum_c u*(gamma*xt - xs) + sum_u*(lse_s - log(sum_u)) ]
    w = jnp.sum(u * (gamma * xt - xs), axis=1, keepdims=True)        # [TN,1]
    row = a * (w + sum_u * (lse_s - jnp.log(sum_u)))                 # [TN,1]

    if needs_mask:
        # Ragged last tile / grid-padding tiles: discard rows past n_rows.
        t = pl.program_id(0) * pl.num_programs(1) + s_idx
        row_idx = t * block_n + jax.lax.broadcasted_iota(jnp.int32, (block_n, 1), 0)
        row = jnp.where(row_idx < n_rows, row, 0.0)

    # Per-partition partial sum, broadcast across the 128-lane output row (lane 0 is
    # read back in the wrapper). The block is resident in VMEM across the inner axis.
    out_ref[...] += jnp.sum(row)


def _vmem_limits():
    """(explicit scoped-VMEM limit, tile-sizing budget) in bytes for this chip."""
    try:
        info = pltpu.get_tpu_info()
        cap = int(getattr(info, "vmem_capacity_bytes", 0)) or (64 << 20)
    except Exception:  # no TPU info available -> conservative default
        cap = 64 << 20
    # v5e/v6e (128 MiB physical) -> 64 MiB scoped; v7x (64 MiB physical) -> 40 MiB.
    limit = min(max(cap - (24 << 20), 32 << 20), 64 << 20)
    return limit, int(limit * 0.7)


_NUM_F32_TEMPS = 6   # conservative count of live [TN, C] f32 temporaries in the body


def _pick_block_n(n, c, itemsize, budget):
    # 2 inputs x 2 pipeline buffers of (tn, c) at input dtype + f32 temporaries.
    bytes_per_row = 4 * c * itemsize + _NUM_F32_TEMPS * c * 4
    cap = budget // max(bytes_per_row, 1)
    cap = max(8, (min(cap, 2048) // 8) * 8)   # multiple of 8 -> legal sublane block dim
    return n if n <= cap else cap             # full dim is always legal


def wttm_loss(y_s, y_t, gamma, beta, *, block_n=None):
    """Pallas TPU implementation of WTTMLoss.forward(y_s, y_t, gamma, beta).

    y_s, y_t: [N, C] logits (f32 or bf16; kernel upcasts on-chip).
    gamma, beta: Python scalars, baked in as compile-time constants.
    """
    assert y_s.shape == y_t.shape and y_s.ndim == 2
    n, c = y_s.shape
    itemsize = jnp.dtype(y_s.dtype).itemsize
    vmem_limit, budget = _vmem_limits()
    if block_n is None:
        block_n = _pick_block_n(n, c, itemsize, budget)

    total_tiles = pl.cdiv(n, block_n)
    p_parts = 2 if total_tiles >= 2 else 1          # leading "parallel" axis (2 TCs on v7x)
    s_steps = pl.cdiv(total_tiles, p_parts)
    pad_tiles = (p_parts * s_steps) != total_tiles  # at most one padded tile
    needs_mask = (p_parts * s_steps * block_n) != n

    if pad_tiles:
        def in_map(p, s):
            return (jnp.minimum(p * s_steps + s, total_tiles - 1), 0)
    else:
        def in_map(p, s):
            return (p * s_steps + s, 0)

    gamma = float(gamma)
    kernel = functools.partial(
        _wttm_kernel, gamma=gamma, n_rows=n, block_n=block_n, needs_mask=needs_mask)

    n_exps = 2 if gamma == 1.0 else 3
    cost = pl.CostEstimate(
        flops=int(10 * n * c),
        transcendentals=int(n_exps * n * c),
        bytes_accessed=int(2 * n * c * itemsize + p_parts * 128 * 4),
    )

    out = pl.pallas_call(
        kernel,
        out_shape=jax.ShapeDtypeStruct((p_parts, 1, 128), jnp.float32),
        grid_spec=pltpu.PrefetchScalarGridSpec(
            num_scalar_prefetch=0,
            grid=(p_parts, s_steps),
            in_specs=[
                pl.BlockSpec((block_n, c), in_map),   # y_s tile
                pl.BlockSpec((block_n, c), in_map),   # y_t tile
            ],
            out_specs=pl.BlockSpec((1, 1, 128), lambda p, s: (p, 0, 0)),
        ),
        compiler_params=pltpu.CompilerParams(
            dimension_semantics=("parallel", "arbitrary"),
            vmem_limit_bytes=int(vmem_limit),
        ),
        cost_estimate=cost,
    )(y_s, y_t)

    partials = out[:, 0, 0]                       # per-partition sum_i norm_i*KL_i
    return (float(beta) / n) * jnp.sum(partials)  # loss = beta * mean_i(norm_i*KL_i)


def _wttm_loss_ref(y_s, y_t, gamma, beta):
    # Pure-JAX reference (mirrors the PyTorch module op-for-op).
    p_s = jax.nn.log_softmax(y_s, axis=1)
    p_t = jnp.power(jax.nn.softmax(y_t, axis=1), gamma)
    norm = jnp.sum(p_t, axis=1)
    p_t = p_t / norm[:, None]
    kl = jnp.sum(p_t * (jnp.log(p_t) - p_s), axis=1)
    return beta * jnp.mean(norm * kl)


if __name__ == "__main__":
    key = jax.random.PRNGKey(0)
    k1, k2, k3, k4 = jax.random.split(key, 4)
    beta = 2.0

    # Small 2D logits consistent with the module: [batch, classes].
    N, C = 8, 100
    y_s = jax.random.normal(k1, (N, C), dtype=jnp.float32) * 3.0
    y_t = jax.random.normal(k2, (N, C), dtype=jnp.float32) * 3.0

    # gamma = 0.5 (EUP sqrt path), single tile.
    out = jax.block_until_ready(wttm_loss(y_s, y_t, 0.5, beta))
    ref = _wttm_loss_ref(y_s, y_t, 0.5, beta)
    np.testing.assert_allclose(np.asarray(out), np.asarray(ref), rtol=2e-5, atol=2e-5)

    # gamma = 1.0 (2-exp fast path), single tile.
    out1 = jax.block_until_ready(wttm_loss(y_s, y_t, 1.0, beta))
    ref1 = _wttm_loss_ref(y_s, y_t, 1.0, beta)
    np.testing.assert_allclose(np.asarray(out1), np.asarray(ref1), rtol=2e-5, atol=2e-5)

    # General gamma, 2x3 grid with a ragged last tile and one grid-padding tile
    # (exercises the clamped index_map, row masking and cross-partition reduction).
    y_s2 = jax.random.normal(k3, (200, C), dtype=jnp.float32) * 3.0
    y_t2 = jax.random.normal(k4, (200, C), dtype=jnp.float32) * 3.0
    out2 = jax.block_until_ready(wttm_loss(y_s2, y_t2, 2.0, beta, block_n=48))
    ref2 = _wttm_loss_ref(y_s2, y_t2, 2.0, beta)
    np.testing.assert_allclose(np.asarray(out2), np.asarray(ref2), rtol=2e-5, atol=2e-5)

    # bf16 logits at the boundary (kernel upcasts on-chip; halves HBM traffic).
    out3 = jax.block_until_ready(
        wttm_loss(y_s.astype(jnp.bfloat16), y_t.astype(jnp.bfloat16), 0.5, beta))
    ref3 = _wttm_loss_ref(y_s.astype(jnp.bfloat16).astype(jnp.float32),
                          y_t.astype(jnp.bfloat16).astype(jnp.float32), 0.5, beta)
    np.testing.assert_allclose(np.asarray(out3), np.asarray(ref3), rtol=1e-4, atol=1e-4)

    print("KERNEL_OK")
</pallas_src>

<mosaic_0001>
module attributes {stable_mosaic.version = 11 : i64} {
  func.func @_wttm_kernel(%arg0: i32, %arg1: i32, %arg2: memref<8x100xf32, #tpu.memory_space<vmem>>, %arg3: memref<8x100xf32, #tpu.memory_space<vmem>>, %arg4: memref<1x1x128xf32, #tpu.memory_space<vmem>>) attributes {dimension_semantics = [#tpu.dimension_semantics<parallel>, #tpu.dimension_semantics<arbitrary>], iteration_bounds = array<i64: 1, 1>, scalar_prefetch = 0 : i64, scratch_operands = 0 : i64, tpu.core_type = #tpu.core_type<tc>, window_params = [{transform_indices = @transform_0, window_bounds = array<i64: 8, 100>}, {transform_indices = @transform_1, window_bounds = array<i64: 8, 100>}, {transform_indices = @transform_2, window_bounds = array<i64: 1, 1, 128>}]} {
    %c0_i32 = arith.constant 0 : i32
    %0 = arith.cmpi eq, %arg1, %c0_i32 : i32
    %1 = arith.extui %0 : i1 to i32
    %c0_i32_0 = arith.constant 0 : i32
    %2 = arith.cmpi ne, %1, %c0_i32_0 : i32
    scf.if %2 {
      %cst_17 = arith.constant 0.000000e+00 : f32
      %43 = vector.broadcast %cst_17 : f32 to vector<1x1x128xf32>
      %c0_18 = arith.constant 0 : index
      %c0_19 = arith.constant 0 : index
      %c0_20 = arith.constant 0 : index
      %44 = vector.load %arg4[%c0_18, %c0_19, %c0_20] : memref<1x1x128xf32, #tpu.memory_space<vmem>>, vector<1x1x128xf32>
      tpu.vector_store %arg4[%c0_18, %c0_19, %c0_20], %43 {strides = array<i32>} : memref<1x1x128xf32, #tpu.memory_space<vmem>>, vector<1x1x128xf32>,
    } else {
    }
    %c0 = arith.constant 0 : index
    %c0_1 = arith.constant 0 : index
    %3 = vector.load %arg2[%c0, %c0_1] : memref<8x100xf32, #tpu.memory_space<vmem>>, vector<8x100xf32>
    %c0_2 = arith.constant 0 : index
    %c0_3 = arith.constant 0 : index
    %4 = vector.load %arg3[%c0_2, %c0_3] : memref<8x100xf32, #tpu.memory_space<vmem>>, vector<8x100xf32>
    %cst = arith.constant dense<0xFF800000> : vector<8xf32>
    %5 = vector.multi_reduction <maximumf>, %3, %cst [1] : vector<8x100xf32> to vector<8xf32>
    %6 = vector.shape_cast %5 : vector<8xf32> to vector<8x1xf32>
    %7 = vector.broadcast %6 : vector<8x1xf32> to vector<8x100xf32>
    %8 = arith.subf %3, %7 : vector<8x100xf32>
    %cst_4 = arith.constant dense<0xFF800000> : vector<8xf32>
    %9 = vector.multi_reduction <maximumf>, %4, %cst_4 [1] : vector<8x100xf32> to vector<8xf32>
    %10 = vector.shape_cast %9 : vector<8xf32> to vector<8x1xf32>
    %11 = vector.broadcast %10 : vector<8x1xf32> to vector<8x100xf32>
    %12 = arith.subf %4, %11 : vector<8x100xf32>
    %13 = math.exp %8 : vector<8x100xf32>
    %cst_5 = arith.constant dense<0.000000e+00> : vector<8xf32>
    %14 = vector.multi_reduction <add>, %13, %cst_5 [1] : vector<8x100xf32> to vector<8xf32>
    %15 = vector.shape_cast %14 : vector<8xf32> to vector<8x1xf32>
    %16 = math.log %15 : vector<8x1xf32>
    %17 = math.exp %12 : vector<8x100xf32>
    %cst_6 = arith.constant dense<0.000000e+00> : vector<8xf32>
    %18 = vector.multi_reduction <add>, %17, %cst_6 [1] : vector<8x100xf32> to vector<8xf32>
    %19 = vector.shape_cast %18 : vector<8xf32> to vector<8x1xf32>
    %20 = math.sqrt %17 : vector<8x100xf32>
    %cst_7 = arith.constant dense<0.000000e+00> : vector<8xf32>
    %21 = vector.multi_reduction <add>, %20, %cst_7 [1] : vector<8x100xf32> to vector<8xf32>
    %22 = vector.shape_cast %21 : vector<8xf32> to vector<8x1xf32>
    %23 = math.rsqrt %19 : vector<8x1xf32>
    %cst_8 = arith.constant 5.000000e-01 : f32
    %24 = vector.broadcast %cst_8 : f32 to vector<8x100xf32>
    %25 = arith.mulf %24, %12 : vector<8x100xf32>
    %26 = arith.subf %25, %8 : vector<8x100xf32>
    %27 = arith.mulf %20, %26 : vector<8x100xf32>
    %cst_9 = arith.constant dense<0.000000e+00> : vector<8xf32>
    %28 = vector.multi_reduction <add>, %27, %cst_9 [1] : vector<8x100xf32> to vector<8xf32>
    %29 = vector.shape_cast %28 : vector<8xf32> to vector<8x1xf32>
    %30 = math.log %22 : vector<8x1xf32>
    %31 = arith.subf %16, %30 : vector<8x1xf32>
    %32 = arith.mulf %22, %31 : vector<8x1xf32>
    %33 = arith.addf %29, %32 : vector<8x1xf32>
    %34 = arith.mulf %23, %33 : vector<8x1xf32>
    %c0_10 = arith.constant 0 : index
    %c0_11 = arith.constant 0 : index
    %c0_12 = arith.constant 0 : index
    %35 = vector.load %arg4[%c0_10, %c0_11, %c0_12] : memref<1x1x128xf32, #tpu.memory_space<vmem>>, vector<1x1x128xf32>
    %36 = vector.shape_cast %34 : vector<8x1xf32> to vector<1x8x1xf32>
    %cst_13 = arith.constant dense<0.000000e+00> : vector<1xf32>
    %37 = vector.multi_reduction <add>, %36, %cst_13 [1, 2] : vector<1x8x1xf32> to vector<1xf32>
    %38 = vector.shape_cast %37 : vector<1xf32> to vector<1x1x1xf32>
    %39 = vector.extract %38[0, 0, 0] : f32 from vector<1x1x1xf32>
    %40 = vector.broadcast %39 : f32 to vector<1x1x128xf32>
    %41 = arith.addf %35, %40 : vector<1x1x128xf32>
    %c0_14 = arith.constant 0 : index
    %c0_15 = arith.constant 0 : index
    %c0_16 = arith.constant 0 : index
    %42 = vector.load %arg4[%c0_14, %c0_15, %c0_16] : memref<1x1x128xf32, #tpu.memory_space<vmem>>, vector<1x1x128xf32>
    tpu.vector_store %arg4[%c0_14, %c0_15, %c0_16], %41 {strides = array<i32>} : memref<1x1x128xf32, #tpu.memory_space<vmem>>, vector<1x1x128xf32>,
    return
  }
  func.func @transform_0(%arg0: i32, %arg1: i32) -> (i32, i32) {
    %c1_i32 = arith.constant 1 : i32
    %0 = arith.muli %arg0, %c1_i32 : i32
    %1 = arith.addi %0, %arg1 : i32
    %c0_i32 = arith.constant 0 : i32
    %c0_i32_0 = arith.constant 0 : i32
    return %1, %c0_i32 : i32, i32
  }
  func.func @transform_1(%arg0: i32, %arg1: i32) -> (i32, i32) {
    %c1_i32 = arith.constant 1 : i32
    %0 = arith.muli %arg0, %c1_i32 : i32
    %1 = arith.addi %0, %arg1 : i32
    %c0_i32 = arith.constant 0 : i32
    %c0_i32_0 = arith.constant 0 : i32
    return %1, %c0_i32 : i32, i32
  }
  func.func @transform_2(%arg0: i32, %arg1: i32) -> (i32, i32, i32) {
    %c0_i32 = arith.constant 0 : i32
    %c0_i32_0 = arith.constant 0 : i32
    %c0_i32_1 = arith.constant 0 : i32
    return %arg0, %c0_i32, %c0_i32_0 : i32, i32, i32
  }
}

</mosaic_0001>

<llo_original>
// kernel: tpu_custom_call.1
$region0: #{tpu_custom_call.1}
  #allocation0 [shape = 'u32[]', space=smem, size = 0x4, offset = 0x4, fixed_abs, tag = 'smem constant byte address 0x4 - core index']
  #allocation1 [shape = 'u32[144,128]{1,0:T(1,128)}', space=vmem, size = 0x12000, scoped, tag = 'internal scratch']
  %s0 = inlined_call_operand.hbm [shape: f32[8,100], index: 0, kind: input, shape index: {}]
  %s1 = inlined_call_operand.hbm [shape: f32[8,100], index: 1, kind: input, shape index: {}]
  %s2 = inlined_call_operand.hbm [shape: f32[1,1,128], index: 2, kind: output, shape index: {}]
  %s3 = sld [smem:[#allocation0]]
  $region30: #{tpu_custom_call.1} parent=0
    _
  %s5 = ssub.s32 1, %s3
  %s6 = scalar_select 0, %s5, %s3
  $region1: #{tpu_custom_call.1} parent=0
    #allocation2 [shape = 'u8[4096]{0}', space=vmem, size = 0x1000, scoped, tag = 'input window, operand 0, single buffered']
    #allocation3 [shape = 's32[1]{0}', space=sflag, size = 0x4, scoped, tag = 'scoped memory for tpu_custom_call.1']
    #allocation4 [shape = 's32[1]{0}', space=sflag, size = 0x4, scoped, tag = 'scoped memory for tpu_custom_call.1']
    #allocation5 [shape = 'u8[4096]{0}', space=vmem, size = 0x1000, scoped, tag = 'input window, operand 1, single buffered']
    #allocation6 [shape = 's32[1]{0}', space=sflag, size = 0x4, scoped, tag = 'scoped memory for tpu_custom_call.1']
    #allocation7 [shape = 'u8[512]{0}', space=vmem, size = 0x400, scoped, tag = 'output window, operand 0, single buffered']
    %7 = vsyncpa [#allocation3], 0
    %8 = vsyncpa [#allocation6], 0
    %9 = vsyncpa [#allocation4], 0
    // Predicated region
    $region2: #{tpu_custom_call.1} parent=1 // pred_check
      _
    $region3: #{tpu_custom_call.1} parent=1 // pred_check_branch
      %11 = sbr.rel (0) target = $region5
    $region4: #{tpu_custom_call.1} parent=1 // pred_region
      %s12 = sadd.s32 0, 0
      %s14 = ssub.s32 128, 128
      %15 = vsyncadd [#allocation3], %s14
      %s16 = smul.addr %s12, 128
      %s17 = scalar_lea.hbm %s0, %s16
      %s19 = sshll.u32 [#allocation2], 4
      %s20 = int_to_ptr.vmem [resolvable:$true] %s19
      %22 = dma.hbm_to_vmem [thread:$0]  %s17, 128, %s20, [#allocation3]
    $region5: #{tpu_custom_call.1} parent=1 // pred_fallthru
      _
    // Predicated region
    $region6: #{tpu_custom_call.1} parent=1 // pred_check
      _
    $region7: #{tpu_custom_call.1} parent=1 // pred_check_branch
      %24 = sbr.rel (0) target = $region9
    $region8: #{tpu_custom_call.1} parent=1 // pred_region
      %s25 = sadd.s32 0, 0
      %s27 = ssub.s32 128, 128
      %28 = vsyncadd [#allocation6], %s27
      %s29 = smul.addr %s25, 128
      %s30 = scalar_lea.hbm %s1, %s29
      %s32 = sshll.u32 [#allocation5], 4
      %s33 = int_to_ptr.vmem [resolvable:$true] %s32
      %35 = dma.hbm_to_vmem [thread:$0]  %s30, 128, %s33, [#allocation6]
    $region9: #{tpu_custom_call.1} parent=1 // pred_fallthru
      _
    // Predicated region
    $region10: #{tpu_custom_call.1} parent=1 // pred_check
      _
    $region11: #{tpu_custom_call.1} parent=1 // pred_check_branch
      %37 = sbr.rel (0) target = $region13
    $region12: #{tpu_custom_call.1} parent=1 // pred_region
      %38 = dma.done [#allocation3], 128
    $region13: #{tpu_custom_call.1} parent=1 // pred_fallthru
      _
    // Predicated region
    $region14: #{tpu_custom_call.1} parent=1 // pred_check
      _
    $region15: #{tpu_custom_call.1} parent=1 // pred_check_branch
      %40 = sbr.rel (0) target = $region17
    $region16: #{tpu_custom_call.1} parent=1 // pred_region
      %41 = dma.done [#allocation6], 128
    $region17: #{tpu_custom_call.1} parent=1 // pred_fallthru
      _
    %s42 = sadd.s32 0, 0
    %s43 = sadd.s32 0, 0
    %p44 = scmp.eq.s32.totalorder 0, 0
    // Predicated region
    $region18: #{tpu_custom_call.1} parent=1 // pred_check
      %p45 = pneg %p44
    $region19: #{tpu_custom_call.1} parent=1 // pred_check_branch
      %47 = sbr.rel (%p45) target = $region21
    $region20: #{tpu_custom_call.1} parent=1 // pred_region
      %48 = vst [vmem:[#allocation7] sm:$0x1] 0.0
    $region21: #{tpu_custom_call.1} parent=1 // pred_fallthru
      _
    %v49 = vld [vmem:[#allocation2] sm:$0xff]
    %v50 = vld [vmem:[#allocation5] sm:$0xff]
    %vm51 = vcmask 818176
    %v52 = vsel %vm51, %v49, -inf
    %53 = vmax.xlane.f32.xlu0 %v52
    %v54 = vpop.xlane.xlu0 %53
    %v55 = vsub.f32 %v49, %v54
    %v56 = vsel %vm51, %v50, -inf
    %57 = vmax.xlane.f32.xlu0 %v56
    %v58 = vpop.xlane.xlu0 %57
    %v59 = vsub.f32 %v50, %v58
    %v60 = vmul.f32 %v55, 1.442695
    %v61 = vpow.pop %v60
    %v62 = vsel %vm51, %v61, 0.0
    %63 = vadd.xlane.f32.xlu0 %v62
    %v64 = vpop.xlane.xlu0 %63
    %v65 = vlog2.pop %v64
    %v66 = vmul.f32 %v65, 0.6931472
    %v67 = vmul.f32 %v59, 1.442695
    %v68 = vpow.pop %v67
    %v69 = vsel %vm51, %v68, 0.0
    %70 = vadd.xlane.f32.xlu0 %v69
    %v71 = vpop.xlane.xlu0 %70
    %v72 = vrsqrt.pop %v68
    %v73 = vmul.f32 %v68, %v72
    %vm74 = vcmp.eq.f32.partialorder %v68, inf
    %v75 = vsel %vm74, %v68, %v73
    %vm76 = vcmp.eq.f32.partialorder %v68, 0.0
    %v77 = vand.u32 %v68, 2147483648
    %v78 = vsel %vm76, %v77, %v75
    %v79 = vsel %vm51, %v78, 0.0
    %80 = vadd.xlane.f32.xlu0 %v79
    %v81 = vpop.xlane.xlu0 %80
    %v82 = vrsqrt.pop %v71
    %v83 = vmul.f32 %v59, 0.5
    %v84 = vsub.f32 %v83, %v55
    %v85 = vmul.f32 %v78, %v84
    %v86 = vsel %vm51, %v85, 0.0
    %87 = vadd.xlane.f32.xlu0 %v86
    %v88 = vpop.xlane.xlu0 %87
    %v89 = vlog2.pop %v81
    %v90 = vmul.f32 %v89, 0.6931472
    %v91 = vsub.f32 %v66, %v90
    %v92 = vmul.f32 %v81, %v91
    %v93 = vadd.f32 %v88, %v92
    %v94 = vmul.f32 %v82, %v93
    %v95 = vld [vmem:[#allocation7] sm:$0x1]
    %vm96 = vcmask 7168
    %v97 = vsel %vm96, %v94, 0.0
    %98 = vadd.xlane.f32.xlu0 %v97
    %v99 = vpop.xlane.xlu0 %98
    %v100 = vrot.slane %v99, 4
    %v101 = vadd.f32 %v99, %v100
    %v102 = vrot.slane %v101, 2
    %v103 = vadd.f32 %v101, %v102
    %v104 = vrot.slane %v103, 1
    %v105 = vadd.f32 %v103, %v104
    %s106 = vtos %v105
    %v107 = vstv %s106
    %v108 = vadd.f32 %v95, %v107
    %109 = vst [vmem:[#allocation7] sm:$0x1] %v108
    // Predicated region
    $region22: #{tpu_custom_call.1} parent=1 // pred_check
      _
    $region23: #{tpu_custom_call.1} parent=1 // pred_check_branch
      %111 = sbr.rel (0) target = $region25
    $region24: #{tpu_custom_call.1} parent=1 // pred_region
      %s113 = ssub.s32 16, 16
      %114 = vsyncadd [#allocation4], %s113
      %s116 = sshll.u32 [#allocation7], 4
      %s117 = int_to_ptr.vmem [resolvable:$true] %s116
      %119 = dma.vmem_to_hbm [thread:$0]  %s117, 16, %s2, [#allocation4]
    $region25: #{tpu_custom_call.1} parent=1 // pred_fallthru
      _
    // Predicated region
    $region26: #{tpu_custom_call.1} parent=1 // pred_check
      _
    $region27: #{tpu_custom_call.1} parent=1 // pred_check_branch
      %121 = sbr.rel (0) target = $region29
    $region28: #{tpu_custom_call.1} parent=1 // pred_region
      %122 = dma.done [#allocation4], 16
    $region29: #{tpu_custom_call.1} parent=1 // pred_fallthru
      _
    %123 = vsyncpa [#allocation3], 1
    %124 = vsyncpa [#allocation6], 1
    %125 = vsyncpa [#allocation4], 1

</llo_original>
